<compile_context>
chip_gen: v5e
topology: v5e:2x2
jax: 0.10.0
libtpu: 0.0.40
codegen_flags: <defaults>
</compile_context>

<pallas_src>
import functools

import jax
import jax.numpy as jnp
import numpy as np
from jax.experimental import pallas as pl
from jax.experimental.pallas import tpu as pltpu


def _round_up(a, b):
    return (a + b - 1) // b * b


def _vmem_limit_bytes():
    """~60% of physical VMEM, clamped to [32 MiB, 100 MiB]."""
    cap = 64 * 1024 * 1024  # conservative fallback (v7x-sized)
    try:
        info = pltpu.get_tpu_info()
        cap = int(getattr(info, "vmem_capacity_bytes", cap) or cap)
    except Exception:
        pass
    return max(32 * 1024 * 1024, min(int(cap * 0.6), 100 * 1024 * 1024))


# ---------------------------------------------------------------------------
# Kernel 1: router logits = x @ W   (MXU, tokens x hidden grid)
#   Outputs:
#     out_ref   : (tn, e_pad)  f32 logits tile (lane-dense, for aux output)
#     out_t_ref : (e_sub, tn)  f32 transposed logits tile (for selection)
# ---------------------------------------------------------------------------
def _logits_kernel(th, e_sub, x_ref, w_ref, out_ref, out_t_ref):
    j = pl.program_id(1)

    @pl.when(j == 0)
    def _():
        out_ref[...] = jnp.zeros_like(out_ref)

    off = pl.multiple_of(j * th, th)
    out_ref[...] += jnp.dot(x_ref[...], w_ref[pl.ds(off, th), :],
                            preferred_element_type=jnp.float32)

    @pl.when(j == pl.num_programs(1) - 1)
    def _():
        # Small transposed copy: experts on sublanes, tokens on lanes.
        out_t_ref[...] = jnp.transpose(out_ref[...])[:e_sub, :]


# ---------------------------------------------------------------------------
# Kernel 2: expert-choice selection from the transposed (E_sub, N) f32 logits
# ---------------------------------------------------------------------------
def _select_kernel(k, n_valid, e_valid, lt_ref, w_ref, idx_ref, cnt_ref):
    logits = lt_ref[...]                                    # (Es, Np) f32
    es, np_ = logits.shape
    neg_inf = jnp.float32(-jnp.inf)

    erow = jax.lax.broadcasted_iota(jnp.int32, (es, 1), 0)   # expert ids
    tcol = jax.lax.broadcasted_iota(jnp.int32, (1, np_), 1)  # token ids
    logits = jnp.where((erow < e_valid) & (tcol < n_valid), logits, neg_inf)

    # Order-preserving int32 keys for f32 values (monotone map).
    def to_key(bits):
        return jnp.where(bits < 0, bits ^ jnp.int32(0x7FFFFFFF), bits)

    keys = to_key(pltpu.bitcast(logits, jnp.int32))          # (Es, Np)

    # Per-expert k-th largest key: exact 32-step binary search (int counts).
    lo0 = to_key(pltpu.bitcast(
        jnp.min(logits, axis=1, keepdims=True), jnp.int32))  # (Es, 1)
    hi0 = to_key(pltpu.bitcast(
        jnp.max(logits, axis=1, keepdims=True), jnp.int32)) + 1

    def body(_, carry):
        lo, hi = carry
        mid = (lo & hi) + ((lo ^ hi) >> 1)       # overflow-safe floor mean
        cnt = jnp.sum((keys >= mid).astype(jnp.int32), axis=1, keepdims=True)
        ge = cnt >= k
        return jnp.where(ge, mid, lo), jnp.where(ge, hi, mid)

    thresh, _ = jax.lax.fori_loop(0, 32, body, (lo0, hi0), unroll=4)

    # Tokens selected by each expert (>= that expert's k-th largest logit).
    masked = jnp.where(keys >= thresh, logits, neg_inf)      # (Es, Np)

    # Best among selecting experts (earliest expert index wins ties).
    score_sel = jnp.max(masked, axis=0, keepdims=True)       # (1, Np)
    idx_sel = jnp.min(jnp.where(masked == score_sel, erow, es),
                      axis=0, keepdims=True)
    # Fallback for unselected tokens: argmax over all logits.
    score_all = jnp.max(logits, axis=0, keepdims=True)
    idx_all = jnp.min(jnp.where(logits == score_all, erow, es),
                      axis=0, keepdims=True)

    any_sel = score_sel > neg_inf
    assignment = jnp.where(any_sel, idx_sel, idx_all).astype(jnp.int32)
    score = jnp.where(any_sel, score_sel, score_all)

    w_ref[...] = score.astype(w_ref.dtype)                   # (1, Np) lane-dense
    idx_ref[...] = assignment                                # (1, Np) lane-dense

    one_hot = jnp.where((assignment == erow) & (tcol < n_valid), 1, 0)
    cnt_ref[...] = jnp.sum(one_hot, axis=1,
                           keepdims=True).astype(cnt_ref.dtype)  # (Es, 1)


# ---------------------------------------------------------------------------
# Wrapper
# ---------------------------------------------------------------------------
def expert_choice_router(x, w_gate, capacity_factor=1.0, matmul_dtype=None):
    """x: (B, S, H) float; w_gate: (H, E) float (== torch gate weight.T)."""
    b, s, h = x.shape
    e = w_gate.shape[1]
    n = b * s
    k = int(n * capacity_factor / e)
    k = max(1, min(k, n))

    compute_dtype = jnp.dtype(matmul_dtype) if matmul_dtype is not None \
        else jnp.dtype(x.dtype)
    itemsize = compute_dtype.itemsize

    # Padded / tiled sizes.
    e_pad = _round_up(e, 128)      # lane-dense logits for the aux output
    e_sub = _round_up(e, 8)        # sublane-dense experts for selection
    h_pad0 = _round_up(h, 128)
    th = h_pad0 if h_pad0 <= 2048 else 2048
    h_pad = _round_up(h_pad0, th)

    vmem_limit = _vmem_limit_bytes()

    def footprint(tn_):
        return (2 * tn_ * th * itemsize          # streamed x (double-buffered)
                + 2 * h_pad * e_pad * itemsize   # resident gate weight (2 bufs worst case)
                + 2 * tn_ * e_pad * 4            # logits output block
                + 2 * e_sub * tn_ * 4)           # transposed logits output block

    # Token tile: biggest of {128,256,512,1024} that still leaves >= 2 grid
    # steps (megacore) and fits the VMEM budget.
    n_pad0 = _round_up(n, 128)
    tn = 128
    for cand in (256, 512, 1024):
        if cand * 2 <= n_pad0 and footprint(cand) + (2 << 20) <= vmem_limit:
            tn = cand
    n_pad = _round_up(n, tn)

    x_flat = x.reshape(n, h).astype(compute_dtype)
    if (n_pad, h_pad) != (n, h):
        x_flat = jnp.pad(x_flat, ((0, n_pad - n), (0, h_pad - h)))
    w_p = w_gate.astype(compute_dtype)
    if (h_pad, e_pad) != (h, e):
        w_p = jnp.pad(w_p, ((0, h_pad - h), (0, e_pad - e)))

    logits_p, logits_t = pl.pallas_call(
        functools.partial(_logits_kernel, th, e_sub),
        out_shape=(
            jax.ShapeDtypeStruct((n_pad, e_pad), jnp.float32),
            jax.ShapeDtypeStruct((e_sub, n_pad), jnp.float32),
        ),
        grid_spec=pltpu.PrefetchScalarGridSpec(
            num_scalar_prefetch=0,
            grid=(n_pad // tn, h_pad // th),
            in_specs=[
                pl.BlockSpec((tn, th), lambda i, j: (i, j)),        # x streams
                pl.BlockSpec((h_pad, e_pad), lambda i, j: (0, 0)),  # W resident
            ],
            out_specs=(
                pl.BlockSpec((tn, e_pad), lambda i, j: (i, 0)),
                pl.BlockSpec((e_sub, tn), lambda i, j: (0, i)),
            ),
        ),
        compiler_params=pltpu.CompilerParams(
            dimension_semantics=("parallel", "arbitrary"),
            vmem_limit_bytes=vmem_limit),
        cost_estimate=pl.CostEstimate(
            flops=2 * n_pad * h_pad * e_pad,
            transcendentals=0,
            bytes_accessed=(n_pad * h_pad + h_pad * e_pad) * itemsize
                           + (n_pad * e_pad + e_sub * n_pad) * 4),
    )(x_flat, w_p)

    weights_p, idx_p, counts_p = pl.pallas_call(
        functools.partial(_select_kernel, k, n, e),
        out_shape=(
            jax.ShapeDtypeStruct((1, n_pad), x.dtype),
            jax.ShapeDtypeStruct((1, n_pad), jnp.int32),
            jax.ShapeDtypeStruct((e_sub, 1), jnp.float32),
        ),
        grid=(1,),
        in_specs=[pl.BlockSpec((e_sub, n_pad), lambda i: (0, 0))],
        out_specs=(
            pl.BlockSpec((1, n_pad), lambda i: (0, 0)),
            pl.BlockSpec((1, n_pad), lambda i: (0, 0)),
            pl.BlockSpec((e_sub, 1), lambda i: (0, 0)),
        ),
        compiler_params=pltpu.CompilerParams(vmem_limit_bytes=vmem_limit),
    )(logits_t)

    routing_weights = weights_p[0, :n].reshape(b, s)
    expert_indices = idx_p[0, :n].reshape(b, s)
    aux = {
        "router_logits": logits_p[:n, :e].astype(x.dtype),
        "aux_loss": jnp.zeros((), x.dtype),
        "expert_counts_delta": counts_p[:e, 0],
    }
    return routing_weights, expert_indices, aux


# ---------------------------------------------------------------------------
# Reference / test
# ---------------------------------------------------------------------------
def _reference_from_logits(logits_np, b, s, k):
    """Numpy replica of the PyTorch assignment loops (from given logits)."""
    n, e = logits_np.shape
    aff = logits_np.T                                   # (E, N)
    order = np.argsort(-aff, axis=1)[:, :k]             # top-k tokens / expert
    assignment = np.full((n,), -1, dtype=np.int64)
    best = np.zeros((n,), dtype=np.float32)
    for ei in range(e):
        for t in order[ei]:
            sc = aff[ei, t]
            if assignment[t] == -1 or sc > best[t]:
                assignment[t] = ei
                best[t] = sc
    for t in range(n):
        if assignment[t] == -1:
            ei = int(np.argmax(logits_np[t]))
            assignment[t] = ei
            best[t] = logits_np[t, ei]
    return best.reshape(b, s), assignment.reshape(b, s)


if __name__ == "__main__":
    batch, seq, hidden, num_experts = 2, 8, 32, 8
    capacity_factor = 1.0

    key = jax.random.PRNGKey(0)
    kx, kw = jax.random.split(key)
    x = jax.random.normal(kx, (batch, seq, hidden), dtype=jnp.float32)
    # nn.Linear(hidden, num_experts, bias=False) default init: U(-1/sqrt(H), 1/sqrt(H))
    bound = 1.0 / np.sqrt(hidden)
    w_gate = jax.random.uniform(kw, (hidden, num_experts), dtype=jnp.float32,
                                minval=-bound, maxval=bound)

    routing_weights, expert_indices, aux = expert_choice_router(
        x, w_gate, capacity_factor)
    jax.block_until_ready((routing_weights, expert_indices,
                           aux["router_logits"], aux["expert_counts_delta"]))

    # Verify against a numpy replica of the PyTorch loops (from kernel logits).
    n = batch * seq
    k = max(1, min(int(n * capacity_factor / num_experts), n))
    ref_w, ref_i = _reference_from_logits(np.asarray(aux["router_logits"]),
                                          batch, seq, k)
    np.testing.assert_allclose(np.asarray(routing_weights), ref_w,
                               rtol=1e-5, atol=1e-5)
    np.testing.assert_array_equal(np.asarray(expert_indices), ref_i)
    ref_counts = np.bincount(np.asarray(ref_i).reshape(-1),
                             minlength=num_experts).astype(np.float32)
    np.testing.assert_allclose(np.asarray(aux["expert_counts_delta"]),
                               ref_counts, rtol=0, atol=0)
    # logits vs plain JAX matmul (loose tolerance for MXU accumulation)
    np.testing.assert_allclose(
        np.asarray(aux["router_logits"]),
        np.asarray(jnp.dot(x.reshape(n, hidden), w_gate)),
        rtol=1e-4, atol=1e-4)

    print("KERNEL_OK")
</pallas_src>

<mosaic_0001>
module attributes {stable_mosaic.version = 11 : i64} {
  func.func @_logits_kernel(%arg0: i32, %arg1: i32, %arg2: memref<128x128xf32, #tpu.memory_space<vmem>>, %arg3: memref<128x128xf32, #tpu.memory_space<vmem>>, %arg4: memref<128x128xf32, #tpu.memory_space<vmem>>, %arg5: memref<8x128xf32, #tpu.memory_space<vmem>>) attributes {dimension_semantics = [#tpu.dimension_semantics<parallel>, #tpu.dimension_semantics<arbitrary>], iteration_bounds = array<i64: 1, 1>, scalar_prefetch = 0 : i64, scratch_operands = 0 : i64, tpu.core_type = #tpu.core_type<tc>, window_params = [{transform_indices = @transform_0, window_bounds = array<i64: 128, 128>}, {pipeline_mode = #tpu.pipeline_mode<synchronous>, transform_indices = @transform_1, window_bounds = array<i64: 128, 128>}, {transform_indices = @transform_2, window_bounds = array<i64: 128, 128>}, {transform_indices = @transform_3, window_bounds = array<i64: 8, 128>}]} {
    %c0_i32 = arith.constant 0 : i32
    %0 = arith.cmpi eq, %arg1, %c0_i32 : i32
    %1 = arith.extui %0 : i1 to i32
    %c0_i32_0 = arith.constant 0 : i32
    %2 = arith.cmpi ne, %1, %c0_i32_0 : i32
    scf.if %2 {
      %cst_9 = arith.constant 0.000000e+00 : f32
      %15 = vector.broadcast %cst_9 : f32 to vector<128x128xf32>
      %c0_10 = arith.constant 0 : index
      %c0_11 = arith.constant 0 : index
      %16 = vector.load %arg4[%c0_10, %c0_11] : memref<128x128xf32, #tpu.memory_space<vmem>>, vector<128x128xf32>
      tpu.vector_store %arg4[%c0_10, %c0_11], %15 {strides = array<i32>} : memref<128x128xf32, #tpu.memory_space<vmem>>, vector<128x128xf32>,
    } else {
    }
    %c128_i32 = arith.constant 128 : i32
    %3 = arith.muli %arg1, %c128_i32 : i32
    %4 = tpu.assume_multiple %3, 128 : i32
    %c0 = arith.constant 0 : index
    %c0_1 = arith.constant 0 : index
    %5 = vector.load %arg4[%c0, %c0_1] : memref<128x128xf32, #tpu.memory_space<vmem>>, vector<128x128xf32>
    %c0_2 = arith.constant 0 : index
    %c0_3 = arith.constant 0 : index
    %6 = vector.load %arg2[%c0_2, %c0_3] : memref<128x128xf32, #tpu.memory_space<vmem>>, vector<128x128xf32>
    %7 = arith.index_cast %4 : i32 to index
    %c0_4 = arith.constant 0 : index
    %8 = vector.load %arg3[%7, %c0_4] : memref<128x128xf32, #tpu.memory_space<vmem>>, vector<128x128xf32>
    %cst = arith.constant dense<0.000000e+00> : vector<128x128xf32>
    %9 = tpu.matmul %6, %8, %cst {dimension_numbers = #tpu.dot_dimension_numbers<[1], [0], [0], [1], [0, 0, 1, 1], [], []>} : vector<128x128xf32>, vector<128x128xf32>, vector<128x128xf32> -> vector<128x128xf32>
    %10 = arith.addf %5, %9 : vector<128x128xf32>
    %c0_5 = arith.constant 0 : index
    %c0_6 = arith.constant 0 : index
    %11 = vector.load %arg4[%c0_5, %c0_6] : memref<128x128xf32, #tpu.memory_space<vmem>>, vector<128x128xf32>
    tpu.vector_store %arg4[%c0_5, %c0_6], %10 {strides = array<i32>} : memref<128x128xf32, #tpu.memory_space<vmem>>, vector<128x128xf32>,
    %c0_i32_7 = arith.constant 0 : i32
    %12 = arith.cmpi eq, %arg1, %c0_i32_7 : i32
    %13 = arith.extui %12 : i1 to i32
    %c0_i32_8 = arith.constant 0 : i32
    %14 = arith.cmpi ne, %13, %c0_i32_8 : i32
    scf.if %14 {
      %c0_9 = arith.constant 0 : index
      %c0_10 = arith.constant 0 : index
      %15 = vector.load %arg4[%c0_9, %c0_10] : memref<128x128xf32, #tpu.memory_space<vmem>>, vector<128x128xf32>
      %16 = tpu.transpose %15, [1, 0] : vector<128x128xf32> -> vector<128x128xf32>
      %17 = vector.extract_strided_slice %16 {offsets = [0, 0], sizes = [8, 128], strides = [1, 1]} : vector<128x128xf32> to vector<8x128xf32>
      %c0_11 = arith.constant 0 : index
      %c0_12 = arith.constant 0 : index
      %18 = vector.load %arg5[%c0_11, %c0_12] : memref<8x128xf32, #tpu.memory_space<vmem>>, vector<8x128xf32>
      tpu.vector_store %arg5[%c0_11, %c0_12], %17 {strides = array<i32>} : memref<8x128xf32, #tpu.memory_space<vmem>>, vector<8x128xf32>,
    } else {
    }
    return
  }
  func.func @transform_0(%arg0: i32, %arg1: i32) -> (i32, i32) {
    %c0_i32 = arith.constant 0 : i32
    return %arg0, %arg1 : i32, i32
  }
  func.func @transform_1(%arg0: i32, %arg1: i32) -> (i32, i32) {
    %c0_i32 = arith.constant 0 : i32
    %c0_i32_0 = arith.constant 0 : i32
    %c0_i32_1 = arith.constant 0 : i32
    return %c0_i32, %c0_i32_0 : i32, i32
  }
  func.func @transform_2(%arg0: i32, %arg1: i32) -> (i32, i32) {
    %c0_i32 = arith.constant 0 : i32
    %c0_i32_0 = arith.constant 0 : i32
    return %arg0, %c0_i32 : i32, i32
  }
  func.func @transform_3(%arg0: i32, %arg1: i32) -> (i32, i32) {
    %c0_i32 = arith.constant 0 : i32
    %c0_i32_0 = arith.constant 0 : i32
    return %c0_i32, %arg0 : i32, i32
  }
}

</mosaic_0001>

<llo_original>
// kernel: tpu_custom_call.1
$region0: #{tpu_custom_call.1}
  #allocation0 [shape = 'u32[]', space=smem, size = 0x4, offset = 0x4, fixed_abs, tag = 'smem constant byte address 0x4 - core index']
  #allocation1 [shape = 'u32[72,128]{1,0:T(1,128)}', space=vmem, size = 0x9000, scoped, tag = 'internal scratch']
  %s0 = inlined_call_operand.hbm [shape: f32[128,128], index: 0, kind: input, shape index: {}]
  %s1 = inlined_call_operand.hbm [shape: f32[128,128], index: 1, kind: input, shape index: {}]
  %s2 = inlined_call_operand.hbm [shape: f32[128,128], index: 2, kind: output, shape index: {0}]
  %s3 = inlined_call_operand.hbm [shape: f32[8,128], index: 3, kind: output, shape index: {1}]
  %4 = xla_tuple %s2, %s3
  %s5 = sld [smem:[#allocation0]]
  $region42: #{tpu_custom_call.1} parent=0
    _
  %s7 = ssub.s32 1, %s5
  %s8 = scalar_select 0, %s7, %s5
  $region1: #{tpu_custom_call.1} parent=0
    #allocation2 [shape = 'u8[65536]{0}', space=vmem, size = 0x10000, scoped, tag = 'input window, operand 0, single buffered']
    #allocation3 [shape = 's32[1]{0}', space=sflag, size = 0x4, scoped, tag = 'scoped memory for tpu_custom_call.1']
    #allocation4 [shape = 's32[1]{0}', space=sflag, size = 0x4, scoped, tag = 'scoped memory for tpu_custom_call.1']
    #allocation5 [shape = 'u8[65536]{0}', space=vmem, size = 0x10000, scoped, tag = 'input window, operand 1, single buffered']
    #allocation6 [shape = 's32[1]{0}', space=sflag, size = 0x4, scoped, tag = 'scoped memory for tpu_custom_call.1']
    #allocation7 [shape = 'u8[65536]{0}', space=vmem, size = 0x10000, scoped, tag = 'output window, operand 0, single buffered']
    #allocation8 [shape = 'u8[4096]{0}', space=vmem, size = 0x1000, scoped, tag = 'output window, operand 1, single buffered']
    #allocation9 [shape = 's32[1]{0}', space=sflag, size = 0x4, scoped, tag = 'scoped memory for tpu_custom_call.1']
    %9 = vsyncpa [#allocation3], 0
    %10 = vsyncpa [#allocation6], 0
    %11 = vsyncpa [#allocation4], 0
    %12 = vsyncpa [#allocation9], 0
    // Predicated region
    $region2: #{tpu_custom_call.1} parent=1 // pred_check
      _
    $region3: #{tpu_custom_call.1} parent=1 // pred_check_branch
      %14 = sbr.rel (0) target = $region5
    $region4: #{tpu_custom_call.1} parent=1 // pred_region
      %16 = vsyncadd [#allocation3], 0
      %s17 = sshll.u32 %s0, 4
      %s18 = int_to_ptr.hbm [resolvable:$true] %s17
      %s19 = sshll.u32 [#allocation2], 4
      %s20 = int_to_ptr.vmem [resolvable:$true] %s19
      %25 = dma.hbm_to_vmem [thread:$0]  %s18, 2048, %s20, [#allocation3], 128, 128, 8
    $region5: #{tpu_custom_call.1} parent=1 // pred_fallthru
      _
    // Predicated region
    $region6: #{tpu_custom_call.1} parent=1 // pred_check
      _
    $region7: #{tpu_custom_call.1} parent=1 // pred_check_branch
      %27 = sbr.rel (0) target = $region9
    $region8: #{tpu_custom_call.1} parent=1 // pred_region
      %29 = vsyncadd [#allocation6], 0
      %s30 = sshll.u32 %s1, 4
      %s31 = int_to_ptr.hbm [resolvable:$true] %s30
      %s32 = sshll.u32 [#allocation5], 4
      %s33 = int_to_ptr.vmem [resolvable:$true] %s32
      %38 = dma.hbm_to_vmem [thread:$0]  %s31, 2048, %s33, [#allocation6], 128, 128, 8
    $region9: #{tpu_custom_call.1} parent=1 // pred_fallthru
      _
    // Predicated region
    $region10: #{tpu_custom_call.1} parent=1 // pred_check
      _
    $region11: #{tpu_custom_call.1} parent=1 // pred_check_branch
      %40 = sbr.rel (0) target = $region13
    $region12: #{tpu_custom_call.1} parent=1 // pred_region
      %42 = dma.done [#allocation3], 2048
    $region13: #{tpu_custom_call.1} parent=1 // pred_fallthru
      _
    // Predicated region
    $region14: #{tpu_custom_call.1} parent=1 // pred_check
      _
    $region15: #{tpu_custom_call.1} parent=1 // pred_check_branch
      %44 = sbr.rel (0) target = $region17
    $region16: #{tpu_custom_call.1} parent=1 // pred_region
      %46 = dma.done [#allocation6], 2048
    $region17: #{tpu_custom_call.1} parent=1 // pred_fallthru
      _
    %p47 = scmp.eq.s32.totalorder 0, 0
    // Predicated region
    $region18: #{tpu_custom_call.1} parent=1 // pred_check
      %p48 = pneg %p47
    $region19: #{tpu_custom_call.1} parent=1 // pred_check_branch
      %50 = sbr.rel (%p48) target = $region21
    $region20: #{tpu_custom_call.1} parent=1 // pred_region
      %51 = vst [vmem:[#allocation7] sm:$0xff] 0.0
      %52 = vst [vmem:[#allocation7 + $0x8] sm:$0xff] 0.0
      %53 = vst [vmem:[#allocation7 + $0x10] sm:$0xff] 0.0
      %54 = vst [vmem:[#allocation7 + $0x18] sm:$0xff] 0.0
      %55 = vst [vmem:[#allocation7 + $0x20] sm:$0xff] 0.0
      %56 = vst [vmem:[#allocation7 + $0x28] sm:$0xff] 0.0
      %57 = vst [vmem:[#allocation7 + $0x30] sm:$0xff] 0.0
      %58 = vst [vmem:[#allocation7 + $0x38] sm:$0xff] 0.0
      %59 = vst [vmem:[#allocation7 + $0x40] sm:$0xff] 0.0
      %60 = vst [vmem:[#allocation7 + $0x48] sm:$0xff] 0.0
      %61 = vst [vmem:[#allocation7 + $0x50] sm:$0xff] 0.0
      %62 = vst [vmem:[#allocation7 + $0x58] sm:$0xff] 0.0
      %63 = vst [vmem:[#allocation7 + $0x60] sm:$0xff] 0.0
      %64 = vst [vmem:[#allocation7 + $0x68] sm:$0xff] 0.0
      %65 = vst [vmem:[#allocation7 + $0x70] sm:$0xff] 0.0
      %66 = vst [vmem:[#allocation7 + $0x78] sm:$0xff] 0.0
    $region21: #{tpu_custom_call.1} parent=1 // pred_fallthru
      _
    %s67 = smul.u32 0, 128
    %v68 = vld [vmem:[#allocation7] sm:$0xff]
    %v69 = vld [vmem:[#allocation7 + $0x8] sm:$0xff]
    %v70 = vld [vmem:[#allocation7 + $0x10] sm:$0xff]
    %v71 = vld [vmem:[#allocation7 + $0x18] sm:$0xff]
    %v72 = vld [vmem:[#allocation7 + $0x20] sm:$0xff]
    %v73 = vld [vmem:[#allocation7 + $0x28] sm:$0xff]
    %v74 = vld [vmem:[#allocation7 + $0x30] sm:$0xff]
    %v75 = vld [vmem:[#allocation7 + $0x38] sm:$0xff]
    %v76 = vld [vmem:[#allocation7 + $0x40] sm:$0xff]
    %v77 = vld [vmem:[#allocation7 + $0x48] sm:$0xff]
    %v78 = vld [vmem:[#allocation7 + $0x50] sm:$0xff]
    %v79 = vld [vmem:[#allocation7 + $0x58] sm:$0xff]
    %v80 = vld [vmem:[#allocation7 + $0x60] sm:$0xff]
    %v81 = vld [vmem:[#allocation7 + $0x68] sm:$0xff]
    %v82 = vld [vmem:[#allocation7 + $0x70] sm:$0xff]
    %v83 = vld [vmem:[#allocation7 + $0x78] sm:$0xff]
    %v84 = vld [vmem:[#allocation2] sm:$0xff]
    %v85 = vld [vmem:[#allocation2 + $0x8] sm:$0xff]
    %v86 = vld [vmem:[#allocation2 + $0x10] sm:$0xff]
    %v87 = vld [vmem:[#allocation2 + $0x18] sm:$0xff]
    %v88 = vld [vmem:[#allocation2 + $0x20] sm:$0xff]
    %v89 = vld [vmem:[#allocation2 + $0x28] sm:$0xff]
    %v90 = vld [vmem:[#allocation2 + $0x30] sm:$0xff]
    %v91 = vld [vmem:[#allocation2 + $0x38] sm:$0xff]
    %v92 = vld [vmem:[#allocation2 + $0x40] sm:$0xff]
    %v93 = vld [vmem:[#allocation2 + $0x48] sm:$0xff]
    %v94 = vld [vmem:[#allocation2 + $0x50] sm:$0xff]
    %v95 = vld [vmem:[#allocation2 + $0x58] sm:$0xff]
    %v96 = vld [vmem:[#allocation2 + $0x60] sm:$0xff]
    %v97 = vld [vmem:[#allocation2 + $0x68] sm:$0xff]
    %v98 = vld [vmem:[#allocation2 + $0x70] sm:$0xff]
    %v99 = vld [vmem:[#allocation2 + $0x78] sm:$0xff]
    %s100 = scalar_lea.vmem [#allocation5], %s67
    %v101 = vld [vmem:[%s100] sm:$0xff]
    %v102 = vld [vmem:[%s100 + $0x8] sm:$0xff]
    %v103 = vld [vmem:[%s100 + $0x10] sm:$0xff]
    %v104 = vld [vmem:[%s100 + $0x18] sm:$0xff]
    %v105 = vld [vmem:[%s100 + $0x20] sm:$0xff]
    %v106 = vld [vmem:[%s100 + $0x28] sm:$0xff]
    %v107 = vld [vmem:[%s100 + $0x30] sm:$0xff]
    %v108 = vld [vmem:[%s100 + $0x38] sm:$0xff]
    %v109 = vld [vmem:[%s100 + $0x40] sm:$0xff]
    %v110 = vld [vmem:[%s100 + $0x48] sm:$0xff]
    %v111 = vld [vmem:[%s100 + $0x50] sm:$0xff]
    %v112 = vld [vmem:[%s100 + $0x58] sm:$0xff]
    %v113 = vld [vmem:[%s100 + $0x60] sm:$0xff]
    %v114 = vld [vmem:[%s100 + $0x68] sm:$0xff]
    %v115 = vld [vmem:[%s100 + $0x70] sm:$0xff]
    %v116 = vld [vmem:[%s100 + $0x78] sm:$0xff]
    %117 = vmatpush.msra.mxu0 %v116
    %118 = vmatpush.msra.mxu0 %v115
    %119 = vmatpush.msra.mxu0 %v114
    %120 = vmatpush.msra.mxu0 %v113
    %121 = vmatpush.msra.mxu0 %v112
    %122 = vmatpush.msra.mxu0 %v111
    %123 = vmatpush.msra.mxu0 %v110
    %124 = vmatpush.msra.mxu0 %v109
    %125 = vmatpush.msra.mxu0 %v108
    %126 = vmatpush.msra.mxu0 %v107
    %127 = vmatpush.msra.mxu0 %v106
    %128 = vmatpush.msra.mxu0 %v105
    %129 = vmatpush.msra.mxu0 %v104
    %130 = vmatpush.msra.mxu0 %v103
    %131 = vmatpush.msra.mxu0 %v102
    %132 = vmatpush.msra.mxu0 %v101
    %133 = vmatmul.f32.gmra.mxu0 %v84
    %v134 = vpop.f32.mrf.mxu0
    %v135 = vadd.f32 0.0, %v134
    %136 = vmatmul.f32.gmra.mxu0 %v85
    %v137 = vpop.f32.mrf.mxu0
    %v138 = vadd.f32 0.0, %v137
    %139 = vmatmul.f32.gmra.mxu0 %v86
    %v140 = vpop.f32.mrf.mxu0
    %v141 = vadd.f32 0.0, %v140
    %142 = vmatmul.f32.gmra.mxu0 %v87
    %v143 = vpop.f32.mrf.mxu0
    %v144 = vadd.f32 0.0, %v143
    %145 = vmatmul.f32.gmra.mxu0 %v88
    %v146 = vpop.f32.mrf.mxu0
    %v147 = vadd.f32 0.0, %v146
    %148 = vmatmul.f32.gmra.mxu0 %v89
    %v149 = vpop.f32.mrf.mxu0
    %v150 = vadd.f32 0.0, %v149
    %151 = vmatmul.f32.gmra.mxu0 %v90
    %v152 = vpop.f32.mrf.mxu0
    %v153 = vadd.f32 0.0, %v152
    %154 = vmatmul.f32.gmra.mxu0 %v91
    %v155 = vpop.f32.mrf.mxu0
    %v156 = vadd.f32 0.0, %v155
    %157 = vmatmul.f32.gmra.mxu0 %v92
    %v158 = vpop.f32.mrf.mxu0
    %v159 = vadd.f32 0.0, %v158
    %160 = vmatmul.f32.gmra.mxu0 %v93
    %v161 = vpop.f32.mrf.mxu0
    %v162 = vadd.f32 0.0, %v161
    %163 = vmatmul.f32.gmra.mxu0 %v94
    %v164 = vpop.f32.mrf.mxu0
    %v165 = vadd.f32 0.0, %v164
    %166 = vmatmul.f32.gmra.mxu0 %v95
    %v167 = vpop.f32.mrf.mxu0
    %v168 = vadd.f32 0.0, %v167
    %169 = vmatmul.f32.gmra.mxu0 %v96
    %v170 = vpop.f32.mrf.mxu0
    %v171 = vadd.f32 0.0, %v170
    %172 = vmatmul.f32.gmra.mxu0 %v97
    %v173 = vpop.f32.mrf.mxu0
    %v174 = vadd.f32 0.0, %v173
    %175 = vmatmul.f32.gmra.mxu0 %v98
    %v176 = vpop.f32.mrf.mxu0
    %v177 = vadd.f32 0.0, %v176
    %178 = vmatmul.f32.gmra.mxu0 %v99
    %v179 = vpop.f32.mrf.mxu0
    %v180 = vadd.f32 0.0, %v179
    %181 = vdwg.mxu0
    %v182 = vadd.f32 %v68, %v135
    %v183 = vadd.f32 %v69, %v138
    %v184 = vadd.f32 %v70, %v141
    %v185 = vadd.f32 %v71, %v144
    %v186 = vadd.f32 %v72, %v147
    %v187 = vadd.f32 %v73, %v150
    %v188 = vadd.f32 %v74, %v153
    %v189 = vadd.f32 %v75, %v156
    %v190 = vadd.f32 %v76, %v159
    %v191 = vadd.f32 %v77, %v162
    %v192 = vadd.f32 %v78, %v165
    %v193 = vadd.f32 %v79, %v168
    %v194 = vadd.f32 %v80, %v171
    %v195 = vadd.f32 %v81, %v174
    %v196 = vadd.f32 %v82, %v177
    %v197 = vadd.f32 %v83, %v180
    %198 = vst [vmem:[#allocation7] sm:$0xff] %v182
    %199 = vst [vmem:[#allocation7 + $0x8] sm:$0xff] %v183
    %200 = vst [vmem:[#allocation7 + $0x10] sm:$0xff] %v184
    %201 = vst [vmem:[#allocation7 + $0x18] sm:$0xff] %v185
    %202 = vst [vmem:[#allocation7 + $0x20] sm:$0xff] %v186
    %203 = vst [vmem:[#allocation7 + $0x28] sm:$0xff] %v187
    %204 = vst [vmem:[#allocation7 + $0x30] sm:$0xff] %v188
    %205 = vst [vmem:[#allocation7 + $0x38] sm:$0xff] %v189
    %206 = vst [vmem:[#allocation7 + $0x40] sm:$0xff] %v190
    %207 = vst [vmem:[#allocation7 + $0x48] sm:$0xff] %v191
    %208 = vst [vmem:[#allocation7 + $0x50] sm:$0xff] %v192
    %209 = vst [vmem:[#allocation7 + $0x58] sm:$0xff] %v193
    %210 = vst [vmem:[#allocation7 + $0x60] sm:$0xff] %v194
    %211 = vst [vmem:[#allocation7 + $0x68] sm:$0xff] %v195
    %212 = vst [vmem:[#allocation7 + $0x70] sm:$0xff] %v196
    %213 = vst [vmem:[#allocation7 + $0x78] sm:$0xff] %v197
    // Predicated region
    $region22: #{tpu_custom_call.1} parent=1 // pred_check
      %p214 = pneg %p47
    $region23: #{tpu_custom_call.1} parent=1 // pred_check_branch
      %216 = sbr.rel (%p214) target = $region25
    $region24: #{tpu_custom_call.1} parent=1 // pred_region
      %v217 = vld [vmem:[#allocation7] sm:$0xff]
      %v218 = vld [vmem:[#allocation7 + $0x8] sm:$0xff]
      %v219 = vld [vmem:[#allocation7 + $0x10] sm:$0xff]
      %v220 = vld [vmem:[#allocation7 + $0x18] sm:$0xff]
      %v221 = vld [vmem:[#allocation7 + $0x20] sm:$0xff]
      %v222 = vld [vmem:[#allocation7 + $0x28] sm:$0xff]
      %v223 = vld [vmem:[#allocation7 + $0x30] sm:$0xff]
      %v224 = vld [vmem:[#allocation7 + $0x38] sm:$0xff]
      %v225 = vld [vmem:[#allocation7 + $0x40] sm:$0xff]
      %v226 = vld [vmem:[#allocation7 + $0x48] sm:$0xff]
      %v227 = vld [vmem:[#allocation7 + $0x50] sm:$0xff]
      %v228 = vld [vmem:[#allocation7 + $0x58] sm:$0xff]
      %v229 = vld [vmem:[#allocation7 + $0x60] sm:$0xff]
      %v230 = vld [vmem:[#allocation7 + $0x68] sm:$0xff]
      %v231 = vld [vmem:[#allocation7 + $0x70] sm:$0xff]
      %v232 = vld [vmem:[#allocation7 + $0x78] sm:$0xff]
      %233 = vxpose.xlu0.b32.start [1/16] %v217, 128
      %234 = vxpose.xlu0.b32.cont [2/16] %v218, 128
      %235 = vxpose.xlu0.b32.cont [3/16] %v219, 128
      %236 = vxpose.xlu0.b32.cont [4/16] %v220, 128
      %237 = vxpose.xlu0.b32.cont [5/16] %v221, 128
      %238 = vxpose.xlu0.b32.cont [6/16] %v222, 128
      %239 = vxpose.xlu0.b32.cont [7/16] %v223, 128
      %240 = vxpose.xlu0.b32.cont [8/16] %v224, 128
      %241 = vxpose.xlu0.b32.cont [9/16] %v225, 128
      %242 = vxpose.xlu0.b32.cont [10/16] %v226, 128
      %243 = vxpose.xlu0.b32.cont [11/16] %v227, 128
      %244 = vxpose.xlu0.b32.cont [12/16] %v228, 128
      %245 = vxpose.xlu0.b32.cont [13/16] %v229, 128
      %246 = vxpose.xlu0.b32.cont [14/16] %v230, 128
      %247 = vxpose.xlu0.b32.cont [15/16] %v231, 128
      %248 = vxpose.xlu0.b32.end [16/16] %v232, 128
      %v249 = vpop.trf.xlu0
      %v250 = vpop.trf.xlu0
      %v251 = vpop.trf.xlu0
      %v252 = vpop.trf.xlu0
      %v253 = vpop.trf.xlu0
      %v254 = vpop.trf.xlu0
      %v255 = vpop.trf.xlu0
      %v256 = vpop.trf.xlu0
      %v257 = vpop.trf.xlu0
      %v258 = vpop.trf.xlu0
      %v259 = vpop.trf.xlu0
      %v260 = vpop.trf.xlu0
      %v261 = vpop.trf.xlu0
      %v262 = vpop.trf.xlu0
      %v263 = vpop.trf.xlu0
      %v264 = vpop.trf.xlu0
      %265 = vst [vmem:[#allocation8] sm:$0xff] %v249
    $region25: #{tpu_custom_call.1} parent=1 // pred_fallthru
      _
    // Predicated region
    $region26: #{tpu_custom_call.1} parent=1 // pred_check
      _
    $region27: #{tpu_custom_call.1} parent=1 // pred_check_branch
      %267 = sbr.rel (0) target = $region29
    $region28: #{tpu_custom_call.1} parent=1 // pred_region
      %269 = vsyncadd [#allocation4], 0
      %s270 = sshll.u32 [#allocation7], 4
      %s271 = int_to_ptr.vmem [resolvable:$true] %s270
      %s272 = sshll.u32 %s2, 4
      %s273 = int_to_ptr.hbm [resolvable:$true] %s272
      %278 = dma.vmem_to_hbm [thread:$0]  %s271, 2048, %s273, [#allocation4], 128, 128, 8
    $region29: #{tpu_custom_call.1} parent=1 // pred_fallthru
      _
    // Predicated region
    $region30: #{tpu_custom_call.1} parent=1 // pred_check
      _
    $region31: #{tpu_custom_call.1} parent=1 // pred_check_branch
      %280 = sbr.rel (0) target = $region33
    $region32: #{tpu_custom_call.1} parent=1 // pred_region
      %282 = vsyncadd [#allocation9], 0
      %s284 = sshll.u32 [#allocation8], 4
      %s285 = int_to_ptr.vmem [resolvable:$true] %s284
      %s286 = sshll.u32 %s3, 4
      %s287 = int_to_ptr.hbm [resolvable:$true] %s286
      %289 = dma.vmem_to_hbm [thread:$0]  %s285, 128, %s287, [#allocation9]
    $region33: #{tpu_custom_call.1} parent=1 // pred_fallthru
      _
    // Predicated region
    $region34: #{tpu_custom_call.1} parent=1 // pred_check
      _
    $region35: #{tpu_custom_call.1} parent=1 // pred_check_branch
      %291 = sbr.rel (0) target = $region37
    $region36: #{tpu_custom_call.1} parent=1 // pred_region
      %293 = dma.done [#allocation4], 2048
    $region37: #{tpu_custom_call.1} parent=1 // pred_fallthru
      _
    // Predicated region
    $region38: #{tpu_custom_call.1} parent=1 // pred_check
      _
    $region39: #{tpu_custom_call.1} parent=1 // pred_check_branch
      %295 = sbr.rel (0) target = $region41
    $region40: #{tpu_custom_call.1} parent=1 // pred_region
      %297 = dma.done [#allocation9], 128
    $region41: #{tpu_custom_call.1} parent=1 // pred_fallthru
      _
    %298 = vsyncpa [#allocation3], 1
    %299 = vsyncpa [#allocation6], 1
    %300 = vsyncpa [#allocation4], 1
    %301 = vsyncpa [#allocation9], 1

</llo_original>
